<compile_context>
chip_gen: v7x
topology: tpu7x:2x2x1
jax: 0.10.0
libtpu: 0.0.40
codegen_flags: <defaults>
</compile_context>

<pallas_src>
import functools

import jax
import jax.numpy as jnp
from jax import lax
from jax.experimental import pallas as pl
from jax.experimental.pallas import tpu as pltpu

EPS = 1e-5
LANE = 128   # lane width: produced activations are padded to multiples of this


# ----------------------------------------------------------------------------
# Small helpers
# ----------------------------------------------------------------------------
def _round_up(x, m):
    return ((x + m - 1) // m) * m


def _pad_last(a, target):
    pad = target - a.shape[-1]
    if pad == 0:
        return a
    cfg = [(0, 0)] * (a.ndim - 1) + [(0, pad)]
    return jnp.pad(a, cfg)


def _pad_rows(a, target):
    pad = target - a.shape[0]
    if pad == 0:
        return a
    cfg = [(0, pad)] + [(0, 0)] * (a.ndim - 1)
    return jnp.pad(a, cfg)


def _vmem_limit_bytes():
    """Generation-aware scoped-VMEM limit: physical capacity minus headroom."""
    cap = 128 * 1024 * 1024
    try:
        info = pltpu.get_tpu_info()
        cap = int(getattr(info, "vmem_capacity_bytes", cap) or cap)
    except Exception:
        pass
    # ~16 MiB headroom for compiler-internal scratch / semaphores / bookkeeping.
    return max(32 * 1024 * 1024, min(cap - 16 * 1024 * 1024, 110 * 1024 * 1024))


def _pick_tm(m):
    """Row tile: aim for >=4 grid steps (feeds both v7x TensorCores and gives
    pipeline depth), <=512 rows, multiple of 16 (bf16 sublane packing)."""
    if m <= 16:
        return m                                   # full-extent block
    tm = _round_up(max(m // 4, 16), 16)
    return min(512, tm, _round_up(m, 16))


def _const_spec(shape, index_map):
    # Constant-per-grid-step blocks (weights / scale / bias): single buffer.
    return pl.BlockSpec(shape, index_map, pipeline_mode=pl.Buffered(1))


def _compiler_params(axes):
    return pltpu.CompilerParams(dimension_semantics=axes,
                                vmem_limit_bytes=_vmem_limit_bytes())


def _cost(flops, bytes_accessed):
    return pl.CostEstimate(flops=int(flops), transcendentals=0,
                           bytes_accessed=int(bytes_accessed))


def fold_bn(gamma, beta, mean, var):
    scale = gamma / jnp.sqrt(var + EPS)
    bias = beta - mean * scale
    return scale, bias


# ----------------------------------------------------------------------------
# Pallas kernels
# ----------------------------------------------------------------------------
def _mm_scale_bias_act_kernel(x_ref, w_ref, s_ref, b_ref, o_ref, *, relu):
    # out = act((x @ w) * scale + bias)      (BN applied on the f32 accumulator)
    acc = jnp.dot(x_ref[...], w_ref[...], preferred_element_type=jnp.float32)
    acc = acc * s_ref[...] + b_ref[...]
    if relu:
        acc = jnp.maximum(acc, 0.0)
    o_ref[...] = acc.astype(o_ref.dtype)


def _mm_proj_res_relu_kernel(h_ref, w3_ref, s3_ref, b3_ref,
                             xs_ref, w0_ref, s0_ref, b0_ref, o_ref):
    # out = relu( (h @ w3)*s3 + b3 + (xs @ w0)*s0 + b0 )   -- shortcut conv fused
    main = jnp.dot(h_ref[...], w3_ref[...], preferred_element_type=jnp.float32)
    sc = jnp.dot(xs_ref[...], w0_ref[...], preferred_element_type=jnp.float32)
    acc = main * s3_ref[...] + b3_ref[...] + sc * s0_ref[...] + b0_ref[...]
    o_ref[...] = jnp.maximum(acc, 0.0).astype(o_ref.dtype)


def _mm_id_res_relu_kernel(h_ref, w3_ref, s3_ref, b3_ref, r_ref, o_ref):
    # out = relu( (h @ w3)*s3 + b3 + residual )            -- identity shortcut
    acc = jnp.dot(h_ref[...], w3_ref[...], preferred_element_type=jnp.float32)
    acc = acc * s3_ref[...] + b3_ref[...] + r_ref[...].astype(jnp.float32)
    o_ref[...] = jnp.maximum(acc, 0.0).astype(o_ref.dtype)


def _conv3x3_kernel(xr_ref, w_ref, s_ref, b_ref, o_ref, *, stride, ho, wo, wqp):
    # xr_ref : (1, s, s, hq, wqp, cp)  stride-phase-reordered padded input (bf16)
    #          wqp is sublane-aligned (multiple of 16) so H slices + reshapes
    #          below are layout-preserving (no per-tap relayout copies).
    # w_ref  : (9, cp, np)             per-tap weights (unscaled, bf16)
    # s_ref  : (1, np)  b_ref : (1, np)   f32 BN scale / bias
    # o_ref  : (1, ho, wo, np)
    cp = xr_ref.shape[-1]
    np_ = o_ref.shape[-1]
    n_qx = -(-3 // stride)                       # ceil(3/stride) column-offset groups

    loaded = {}                                  # trace-time dedup of plane loads

    def tap_rows(py, px, qy):
        key = (py, px, qy)
        if key not in loaded:
            rows = xr_ref[0, py, px, qy:qy + ho, :, :]      # tile-aligned slice
            loaded[key] = rows.reshape(ho * wqp, cp)        # layout-preserving
        return loaded[key]

    res = None
    for qx in range(n_qx):
        acc = jnp.zeros((ho * wqp, np_), jnp.float32)
        for ky in range(3):
            py, qy = ky % stride, ky // stride
            for kx in range(3):
                if kx // stride != qx:
                    continue
                px = kx % stride
                acc = acc + jnp.dot(tap_rows(py, px, qy),
                                    w_ref[ky * 3 + kx],
                                    preferred_element_type=jnp.float32)
        # Single f32 crop per column-offset group (instead of 9 bf16 relayouts).
        contrib = acc.reshape(ho, wqp, np_)[:, qx:qx + wo, :]
        res = contrib if res is None else res + contrib
    res = res * s_ref[0] + b_ref[0]
    o_ref[0] = jnp.maximum(res, 0.0).astype(o_ref.dtype)


# ----------------------------------------------------------------------------
# Kernel wrappers
# ----------------------------------------------------------------------------
def matmul_scale_bias_act(x2d, w, scale, bias, *, relu, out_dtype):
    """act((x2d @ w) * scale + bias). x2d: (M, K), w: (K, N) bf16, scale/bias: (1, N) f32."""
    m, k = x2d.shape
    n = w.shape[1]
    tm = _pick_tm(m)
    grid_m = pl.cdiv(m, tm)
    bytes_acc = (x2d.size * x2d.dtype.itemsize + w.size * 2 + 2 * n * 4
                 + m * n * jnp.dtype(out_dtype).itemsize)
    return pl.pallas_call(
        functools.partial(_mm_scale_bias_act_kernel, relu=relu),
        out_shape=jax.ShapeDtypeStruct((m, n), out_dtype),
        grid_spec=pltpu.PrefetchScalarGridSpec(
            num_scalar_prefetch=0,
            grid=(grid_m,),
            in_specs=[
                pl.BlockSpec((tm, k), lambda i: (i, 0)),
                _const_spec((k, n), lambda i: (0, 0)),
                _const_spec((1, n), lambda i: (0, 0)),
                _const_spec((1, n), lambda i: (0, 0)),
            ],
            out_specs=pl.BlockSpec((tm, n), lambda i: (i, 0)),
        ),
        compiler_params=_compiler_params(("parallel",)),
        cost_estimate=_cost(2 * m * k * n, bytes_acc),
    )(x2d, w, scale, bias)


def matmul_proj_res_relu(h2d, w3, s3, b3, xs2d, w0, s0, b0, *, out_dtype):
    """relu( (h2d @ w3)*s3 + b3 + (xs2d @ w0)*s0 + b0 ) -- projection shortcut fused."""
    m, k3 = h2d.shape
    n = w3.shape[1]
    k0 = xs2d.shape[1]
    tm = _pick_tm(m)
    grid_m = pl.cdiv(m, tm)
    bytes_acc = (h2d.size * 2 + xs2d.size * 2 + (k3 + k0) * n * 2 + 4 * n * 4
                 + m * n * jnp.dtype(out_dtype).itemsize)
    return pl.pallas_call(
        _mm_proj_res_relu_kernel,
        out_shape=jax.ShapeDtypeStruct((m, n), out_dtype),
        grid_spec=pltpu.PrefetchScalarGridSpec(
            num_scalar_prefetch=0,
            grid=(grid_m,),
            in_specs=[
                pl.BlockSpec((tm, k3), lambda i: (i, 0)),
                _const_spec((k3, n), lambda i: (0, 0)),
                _const_spec((1, n), lambda i: (0, 0)),
                _const_spec((1, n), lambda i: (0, 0)),
                pl.BlockSpec((tm, k0), lambda i: (i, 0)),
                _const_spec((k0, n), lambda i: (0, 0)),
                _const_spec((1, n), lambda i: (0, 0)),
                _const_spec((1, n), lambda i: (0, 0)),
            ],
            out_specs=pl.BlockSpec((tm, n), lambda i: (i, 0)),
        ),
        compiler_params=_compiler_params(("parallel",)),
        cost_estimate=_cost(2 * m * (k3 + k0) * n, bytes_acc),
    )(h2d, w3, s3, b3, xs2d, w0, s0, b0)


def matmul_id_res_relu(h2d, w3, s3, b3, res2d, *, out_dtype):
    """relu( (h2d @ w3)*s3 + b3 + res2d ) -- identity shortcut."""
    m, k = h2d.shape
    n = w3.shape[1]
    tm = _pick_tm(m)
    grid_m = pl.cdiv(m, tm)
    bytes_acc = (h2d.size * 2 + res2d.size * 2 + k * n * 2 + 2 * n * 4
                 + m * n * jnp.dtype(out_dtype).itemsize)
    return pl.pallas_call(
        _mm_id_res_relu_kernel,
        out_shape=jax.ShapeDtypeStruct((m, n), out_dtype),
        grid_spec=pltpu.PrefetchScalarGridSpec(
            num_scalar_prefetch=0,
            grid=(grid_m,),
            in_specs=[
                pl.BlockSpec((tm, k), lambda i: (i, 0)),
                _const_spec((k, n), lambda i: (0, 0)),
                _const_spec((1, n), lambda i: (0, 0)),
                _const_spec((1, n), lambda i: (0, 0)),
                pl.BlockSpec((tm, n), lambda i: (i, 0)),
            ],
            out_specs=pl.BlockSpec((tm, n), lambda i: (i, 0)),
        ),
        compiler_params=_compiler_params(("parallel",)),
        cost_estimate=_cost(2 * m * k * n, bytes_acc),
    )(h2d, w3, s3, b3, res2d)


def conv3x3_scale_bias_relu(x_nhwc, w_taps, scale, bias, stride, *, out_dtype):
    """3x3 conv, padding=1, stride `stride`, + BN(scale,bias) + ReLU.

    x_nhwc : (N, H, W, Cp) bf16 (channels already lane-padded by the producer)
    w_taps : (9, Cp, Np)   bf16 per-tap weights (unscaled)
    scale  : (1, Np) f32   bias : (1, Np) f32
    returns (N, Ho, Wo, Np)
    """
    n, h, w, cp = x_nhwc.shape
    np_ = w_taps.shape[-1]
    ho = (h - 1) // stride + 1
    wo = (w - 1) // stride + 1
    hq = ho + 2                               # rows needed per phase plane
    wqp = _round_up(wo + 2, 16)               # sublane-aligned plane width (bf16)
    # Pad (conv pad=1 + alignment) and split each spatial axis into
    # (index, stride-phase): padded row r = m*stride + p  -> xr[:, p_y, p_x, m_y, m_x, :]
    xp = jnp.pad(x_nhwc, ((0, 0),
                          (1, stride * hq - h - 1),
                          (1, stride * wqp - w - 1),
                          (0, 0)))
    xr = xp.reshape(n, hq, stride, wqp, stride, cp).transpose(0, 2, 4, 1, 3, 5)

    bytes_acc = (xr.size * 2 + w_taps.size * 2 + 2 * np_ * 4
                 + n * ho * wo * np_ * jnp.dtype(out_dtype).itemsize)
    return pl.pallas_call(
        functools.partial(_conv3x3_kernel, stride=stride, ho=ho, wo=wo, wqp=wqp),
        out_shape=jax.ShapeDtypeStruct((n, ho, wo, np_), out_dtype),
        grid_spec=pltpu.PrefetchScalarGridSpec(
            num_scalar_prefetch=0,
            grid=(n,),
            in_specs=[
                pl.BlockSpec((1, stride, stride, hq, wqp, cp),
                             lambda i: (i, 0, 0, 0, 0, 0)),
                _const_spec((9, cp, np_), lambda i: (0, 0, 0)),
                _const_spec((1, np_), lambda i: (0, 0)),
                _const_spec((1, np_), lambda i: (0, 0)),
            ],
            out_specs=pl.BlockSpec((1, ho, wo, np_), lambda i: (i, 0, 0, 0)),
        ),
        compiler_params=_compiler_params(("parallel",)),
        cost_estimate=_cost(2 * n * 9 * (ho * wqp) * cp * np_, bytes_acc),
    )(xr, w_taps, scale, bias)


# ----------------------------------------------------------------------------
# Bottleneck forward
# ----------------------------------------------------------------------------
def bottleneck_forward(x_nchw, params, stride):
    """Pallas Bottleneck forward (eval-mode BN, ReLU). x: NCHW f32 -> NCHW f32."""
    x = jnp.transpose(x_nchw, (0, 2, 3, 1))                  # NHWC
    n, h, w, cin = x.shape
    planes = params["w1"].shape[1]
    cout = 4 * planes

    pln_p = _round_up(planes, LANE)   # lane-padded width of *produced* activations
    co_p = _round_up(cout, LANE)

    s1, b1 = fold_bn(*params["bn1"])
    s2, b2 = fold_bn(*params["bn2"])
    s3, b3 = fold_bn(*params["bn3"])

    # Weights: keep K (the actual input channel count) unpadded; lane-pad only
    # the output columns, so each kernel *produces* lane-dense padded outputs.
    w1 = _pad_last(params["w1"], pln_p).astype(jnp.bfloat16)            # (cin, pln_p)
    s1v = _pad_last(s1[None, :], pln_p)
    b1v = _pad_last(b1[None, :], pln_p)

    w2 = jnp.pad(params["w2"],                                          # HWIO
                 ((0, 0), (0, 0), (0, pln_p - planes), (0, pln_p - planes)))
    w2 = w2.reshape(9, pln_p, pln_p).astype(jnp.bfloat16)
    s2v = _pad_last(s2[None, :], pln_p)
    b2v = _pad_last(b2[None, :], pln_p)

    w3 = _pad_last(_pad_rows(params["w3"], pln_p), co_p).astype(jnp.bfloat16)
    s3v = _pad_last(s3[None, :], co_p)
    b3v = _pad_last(b3[None, :], co_p)

    xb = x.astype(jnp.bfloat16)            # no channel padding of the input

    # conv1 (1x1) + bn1 + ReLU
    h1 = matmul_scale_bias_act(xb.reshape(n * h * w, cin), w1, s1v, b1v,
                               relu=True, out_dtype=jnp.bfloat16)
    h1 = h1.reshape(n, h, w, pln_p)

    # conv2 (3x3, stride, pad=1) + bn2 + ReLU (in-kernel tap accumulation)
    h2 = conv3x3_scale_bias_relu(h1, w2, s2v, b2v, stride,
                                 out_dtype=jnp.bfloat16)     # (n, ho, wo, pln_p)
    ho, wo = h2.shape[1], h2.shape[2]
    h2 = h2.reshape(n * ho * wo, pln_p)

    # conv3 (1x1) + bn3 + shortcut + ReLU fused into a single kernel
    if stride != 1 or cin != cout:
        s0, b0 = fold_bn(*params["bn0"])
        w0 = _pad_last(params["w0"], co_p).astype(jnp.bfloat16)          # (cin, co_p)
        s0v = _pad_last(s0[None, :], co_p)
        b0v = _pad_last(b0[None, :], co_p)
        # TODO(synk): this strided subsample is one XLA gather pass; could be
        #             folded into the kernel via a spatially tiled grid.
        xs = xb[:, ::stride, ::stride, :].reshape(n * ho * wo, cin)
        out2d = matmul_proj_res_relu(h2, w3, s3v, b3v, xs, w0, s0v, b0v,
                                     out_dtype=jnp.bfloat16)
    else:
        assert cin == cout, "identity shortcut requires in_planes == 4*planes"
        res = xb.reshape(n * ho * wo, cin)
        if cin != co_p:               # only for toy channel counts (< 128)
            res = _pad_last(res, co_p)
        out2d = matmul_id_res_relu(h2, w3, s3v, b3v, res, out_dtype=jnp.bfloat16)

    out = out2d.reshape(n, ho, wo, co_p)[..., :cout]
    return jnp.transpose(out, (0, 3, 1, 2)).astype(jnp.float32)          # NCHW f32


# ----------------------------------------------------------------------------
# Pure-JAX reference (for correctness check)
# ----------------------------------------------------------------------------
def reference_forward(x_nchw, params, stride):
    x = jnp.transpose(x_nchw, (0, 2, 3, 1))
    dn = ("NHWC", "HWIO", "NHWC")

    def conv(a, w_hwio, s=1, p=0):
        return lax.conv_general_dilated(a, w_hwio, (s, s), [(p, p), (p, p)],
                                        dimension_numbers=dn)

    def bn(a, prm):
        g, b, m, v = prm
        return (a - m) / jnp.sqrt(v + EPS) * g + b

    relu = lambda a: jnp.maximum(a, 0.0)
    planes = params["w1"].shape[1]
    cin = x.shape[-1]
    cout = 4 * planes

    w1 = params["w1"].reshape(1, 1, cin, planes)
    w3 = params["w3"].reshape(1, 1, planes, cout)

    h1 = relu(bn(conv(x, w1), params["bn1"]))
    h2 = relu(bn(conv(h1, params["w2"], s=stride, p=1), params["bn2"]))
    h3 = bn(conv(h2, w3), params["bn3"])
    if stride != 1 or cin != cout:
        w0 = params["w0"].reshape(1, 1, cin, cout)
        sc = bn(conv(x, w0, s=stride), params["bn0"])
    else:
        sc = x
    out = relu(h3 + sc)
    return jnp.transpose(out, (0, 3, 1, 2))


# ----------------------------------------------------------------------------
# Main
# ----------------------------------------------------------------------------
if __name__ == "__main__":
    key = jax.random.PRNGKey(0)

    def _bf16_round(a):
        return a.astype(jnp.bfloat16).astype(jnp.float32)

    def bn_params(c, k):
        gamma = 1.0 + 0.1 * jax.random.normal(k, (c,), jnp.float32)
        beta = 0.05 * jnp.arange(c, dtype=jnp.float32)
        mean = 0.01 * jnp.arange(c, dtype=jnp.float32)
        var = 1.0 + 0.1 * jnp.abs(jnp.sin(jnp.arange(c, dtype=jnp.float32)))
        return (gamma, beta, mean, var)

    def make_case(k, in_planes, planes, N=2, H=16, W=16):
        cout = 4 * planes
        ks = jax.random.split(k, 8)
        x = _bf16_round(jax.random.normal(ks[0], (N, in_planes, H, W), jnp.float32))
        params = {
            "w1": _bf16_round(0.1 * jax.random.normal(ks[1], (in_planes, planes))),
            "w2": _bf16_round(0.1 * jax.random.normal(ks[2], (3, 3, planes, planes))),
            "w3": _bf16_round(0.1 * jax.random.normal(ks[3], (planes, cout))),
            "w0": _bf16_round(0.1 * jax.random.normal(ks[4], (in_planes, cout))),
            "bn1": bn_params(planes, ks[5]),
            "bn2": bn_params(planes, ks[6]),
            "bn3": bn_params(cout, ks[7]),
            "bn0": bn_params(cout, ks[7]),
        }
        return x, params

    k1, k2 = jax.random.split(key)

    # Case 1: downsampling block (stride 2, projection shortcut fused in-kernel).
    x, params = make_case(k1, in_planes=4, planes=4)
    out = jax.block_until_ready(bottleneck_forward(x, params, 2))
    ref = jax.block_until_ready(reference_forward(x, params, 2))
    assert out.shape == (2, 16, 8, 8), out.shape
    assert jnp.allclose(out, ref, rtol=2e-2, atol=2e-2), (
        float(jnp.max(jnp.abs(out - ref))))

    # Case 2: identity-shortcut block (stride 1, in_planes == 4*planes).
    x, params = make_case(k2, in_planes=16, planes=4)
    out = jax.block_until_ready(bottleneck_forward(x, params, 1))
    ref = jax.block_until_ready(reference_forward(x, params, 1))
    assert out.shape == (2, 16, 16, 16), out.shape
    assert jnp.allclose(out, ref, rtol=2e-2, atol=2e-2), (
        float(jnp.max(jnp.abs(out - ref))))

    print("KERNEL_OK")
</pallas_src>

<mosaic_0001>
module attributes {stable_mosaic.version = 11 : i64} {
  func.func @_mm_scale_bias_act_kernel(%arg0: i32, %arg1: memref<128x4xbf16, #tpu.memory_space<vmem>>, %arg2: memref<4x128xbf16, #tpu.memory_space<vmem>>, %arg3: memref<1x128xf32, #tpu.memory_space<vmem>>, %arg4: memref<1x128xf32, #tpu.memory_space<vmem>>, %arg5: memref<128x128xbf16, #tpu.memory_space<vmem>>) attributes {dimension_semantics = [#tpu.dimension_semantics<parallel>], iteration_bounds = array<i64: 4>, scalar_prefetch = 0 : i64, scratch_operands = 0 : i64, tpu.core_type = #tpu.core_type<tc>, window_params = [{transform_indices = @transform_0, window_bounds = array<i64: 128, 4>}, {pipeline_mode = #tpu.pipeline_mode<synchronous>, transform_indices = @transform_1, window_bounds = array<i64: 4, 128>}, {pipeline_mode = #tpu.pipeline_mode<synchronous>, transform_indices = @transform_2, window_bounds = array<i64: 1, 128>}, {pipeline_mode = #tpu.pipeline_mode<synchronous>, transform_indices = @transform_3, window_bounds = array<i64: 1, 128>}, {transform_indices = @transform_4, window_bounds = array<i64: 128, 128>}]} {
    %c0 = arith.constant 0 : index
    %c0_0 = arith.constant 0 : index
    %0 = vector.load %arg1[%c0, %c0_0] : memref<128x4xbf16, #tpu.memory_space<vmem>>, vector<128x4xbf16>
    %c0_1 = arith.constant 0 : index
    %c0_2 = arith.constant 0 : index
    %1 = vector.load %arg2[%c0_1, %c0_2] : memref<4x128xbf16, #tpu.memory_space<vmem>>, vector<4x128xbf16>
    %cst = arith.constant dense<0.000000e+00> : vector<128x128xf32>
    %2 = tpu.matmul %0, %1, %cst {dimension_numbers = #tpu.dot_dimension_numbers<[1], [0], [0], [1], [0, 0, 1, 1], [], []>} : vector<128x4xbf16>, vector<4x128xbf16>, vector<128x128xf32> -> vector<128x128xf32>
    %c0_3 = arith.constant 0 : index
    %c0_4 = arith.constant 0 : index
    %3 = vector.load %arg3[%c0_3, %c0_4] : memref<1x128xf32, #tpu.memory_space<vmem>>, vector<1x128xf32>
    %4 = vector.broadcast %3 : vector<1x128xf32> to vector<128x128xf32>
    %5 = arith.mulf %2, %4 : vector<128x128xf32>
    %c0_5 = arith.constant 0 : index
    %c0_6 = arith.constant 0 : index
    %6 = vector.load %arg4[%c0_5, %c0_6] : memref<1x128xf32, #tpu.memory_space<vmem>>, vector<1x128xf32>
    %7 = vector.broadcast %6 : vector<1x128xf32> to vector<128x128xf32>
    %8 = arith.addf %5, %7 : vector<128x128xf32>
    %cst_7 = arith.constant 0.000000e+00 : f32
    %9 = vector.broadcast %cst_7 : f32 to vector<128x128xf32>
    %10 = arith.maximumf %8, %9 : vector<128x128xf32>
    %11 = arith.truncf %10 : vector<128x128xf32> to vector<128x128xbf16>
    %c0_8 = arith.constant 0 : index
    %c0_9 = arith.constant 0 : index
    %12 = vector.load %arg5[%c0_8, %c0_9] : memref<128x128xbf16, #tpu.memory_space<vmem>>, vector<128x128xbf16>
    tpu.vector_store %arg5[%c0_8, %c0_9], %11 {strides = array<i32>} : memref<128x128xbf16, #tpu.memory_space<vmem>>, vector<128x128xbf16>,
    return
  }
  func.func @transform_0(%arg0: i32) -> (i32, i32) {
    %c0_i32 = arith.constant 0 : i32
    %c0_i32_0 = arith.constant 0 : i32
    return %arg0, %c0_i32 : i32, i32
  }
  func.func @transform_1(%arg0: i32) -> (i32, i32) {
    %c0_i32 = arith.constant 0 : i32
    %c0_i32_0 = arith.constant 0 : i32
    %c0_i32_1 = arith.constant 0 : i32
    return %c0_i32, %c0_i32_0 : i32, i32
  }
  func.func @transform_2(%arg0: i32) -> (i32, i32) {
    %c0_i32 = arith.constant 0 : i32
    %c0_i32_0 = arith.constant 0 : i32
    %c0_i32_1 = arith.constant 0 : i32
    return %c0_i32, %c0_i32_0 : i32, i32
  }
  func.func @transform_3(%arg0: i32) -> (i32, i32) {
    %c0_i32 = arith.constant 0 : i32
    %c0_i32_0 = arith.constant 0 : i32
    %c0_i32_1 = arith.constant 0 : i32
    return %c0_i32, %c0_i32_0 : i32, i32
  }
  func.func @transform_4(%arg0: i32) -> (i32, i32) {
    %c0_i32 = arith.constant 0 : i32
    %c0_i32_0 = arith.constant 0 : i32
    return %arg0, %c0_i32 : i32, i32
  }
}

</mosaic_0001>

<llo_original>
// kernel: tpu_custom_call.1
$region0: #{tpu_custom_call.1}
  #allocation0 [shape = 'u32[]', space=smem, size = 0x4, offset = 0x4, fixed_abs, tag = 'smem constant byte address 0x4 - core index']
  #allocation1 [shape = 'u32[144,128]{1,0:T(1,128)}', space=vmem, size = 0x12000, scoped, tag = 'internal scratch']
  %s0 = inlined_call_operand.hbm [shape: bf16[512,4], index: 0, kind: input, shape index: {}]
  %s1 = inlined_call_operand.hbm [shape: bf16[4,128], index: 1, kind: input, shape index: {}]
  %s2 = inlined_call_operand.hbm [shape: f32[1,128], index: 2, kind: input, shape index: {}]
  %s3 = inlined_call_operand.hbm [shape: f32[1,128], index: 3, kind: input, shape index: {}]
  %s4 = inlined_call_operand.hbm [shape: bf16[512,128], index: 4, kind: output, shape index: {}]
  %s5 = sld [smem:[#allocation0]]
  $region65: #{tpu_custom_call.1} parent=0
    _
  %s7 = ssub.s32 1, %s5
  %s8 = scalar_select 0, %s7, %s5
  $region1: #{tpu_custom_call.1} parent=0
    #allocation2 [shape = 'u8[65536]{0}', space=vmem, size = 0x10000, scoped, tag = 'input window, operand 0']
    #allocation3 [shape = 's32[2]{0}', space=sflag, size = 0x8, scoped, tag = 'scoped memory for tpu_custom_call.1']
    #allocation4 [shape = 's32[2]{0}', space=sflag, size = 0x8, scoped, tag = 'scoped memory for tpu_custom_call.1']
    #allocation5 [shape = 'u8[1024]{0}', space=vmem, size = 0x400, scoped, tag = 'input window, operand 1, single buffered']
    #allocation6 [shape = 's32[1]{0}', space=sflag, size = 0x4, scoped, tag = 'scoped memory for tpu_custom_call.1']
    #allocation7 [shape = 'u8[512]{0}', space=vmem, size = 0x400, scoped, tag = 'input window, operand 2, single buffered']
    #allocation8 [shape = 'u8[512]{0}', space=vmem, size = 0x400, scoped, tag = 'input window, operand 3, single buffered']
    #allocation9 [shape = 's32[1]{0}', space=sflag, size = 0x4, scoped, tag = 'scoped memory for tpu_custom_call.1']
    #allocation10 [shape = 'u8[65536]{0}', space=vmem, size = 0x10000, scoped, tag = 'output window, operand 0']
    %9 = vsyncpa [#allocation3], 0
    %s10 = scalar_lea.sflag [#allocation3], 1
    %11 = vsyncpa %s10, 0
    %12 = vsyncpa [#allocation6], 0
    %13 = vsyncpa [#allocation9], 0
    %14 = vsyncpa [#allocation4], 0
    %s15 = scalar_lea.sflag [#allocation4], 1
    %16 = vsyncpa %s15, 0
    loop: start=0, step=1, limit=6
    $region2: #{tpu_custom_call.1} parent=1 // loop_pre_header
      _
    $region3: #{tpu_custom_call.1} parent=1 // loop_header
      %s18 = sphi 0, %s22
      %p19 = scmp.ge.s32.totalorder %s18, 6
      %s28 = sphi 0, %s30
      %s31 = sphi 0, %s28
      %s32 = sphi 0, %s31
      %s48 = sphi 0, %s32
      %s52 = sphi 0, %s52
      %s54 = sphi 0, %s52
      %s55 = sphi 0, %s54
      %s69 = sphi 0, %s55
      %s73 = sphi 0, %s73
      %s75 = sphi 0, %s73
      %s76 = sphi 0, %s75
      %s90 = sphi 0, %s76
      %s94 = sphi 0, %s94
      %s96 = sphi 0, %s94
      %s97 = sphi 0, %s96
      %s111 = sphi 0, %s97
      %s117 = sphi 0, %s119
      %s120 = sphi 0, %s117
      %s121 = sphi 0, %s120
      %s137 = sphi 0, %s121
    $region4: #{tpu_custom_call.1} parent=1 // loop_header_branch
      %21 = sbr.rel (%p19) target = $region8
    $region5: #{tpu_custom_call.1} parent=1 // loop_body
      %s23 = ssub.s32 %s18, 1
      %s24 = ssub.s32 %s18, 2
      %s25 = sadd.s32 %s18, 1
      %s26 = ssub.s32 %s18, %s25
      %p27 = scmp.eq.s32.totalorder %s26, 0
      %s29 = sadd.s32 %s28, 1
      %s30 = scalar_select %p27, %s28, %s29
      %p33 = pneg %p27
      %p34 = scmp.eq.s32.totalorder %s18, 3
      %p35 = por %p33, %p34
      %p36 = scmp.ne.s32.totalorder %s28, %s31
      %p37 = scmp.eq.s32.totalorder %s18, 0
      %p38 = por %p36, %p37
      %p39 = scmp.ne.s32.totalorder %s28, %s31
      %p40 = scmp.eq.s32.totalorder %s23, 3
      %p41 = por %p39, %p40
      %p42 = scmp.ne.s32.totalorder %s31, %s32
      %p43 = scmp.eq.s32.totalorder %s23, 0
      %p44 = por %p42, %p43
      %p45 = scmp.ne.s32.totalorder %s31, %s32
      %p46 = scmp.eq.s32.totalorder %s24, 3
      %p47 = por %p45, %p46
      %p49 = scmp.ne.s32.totalorder %s32, %s48
      %p50 = scmp.eq.s32.totalorder %s24, 0
      %p51 = por %p49, %p50
      %s53 = sadd.s32 %s52, 1
      %p56 = scmp.eq.s32.totalorder %s18, 3
      %p57 = scmp.ne.s32.totalorder %s52, %s54
      %p58 = scmp.eq.s32.totalorder %s18, 0
      %p59 = por %p57, %p58
      %p60 = scmp.ne.s32.totalorder %s52, %s54
      %p61 = scmp.eq.s32.totalorder %s23, 3
      %p62 = por %p60, %p61
      %p63 = scmp.ne.s32.totalorder %s54, %s55
      %p64 = scmp.eq.s32.totalorder %s23, 0
      %p65 = por %p63, %p64
      %p66 = scmp.ne.s32.totalorder %s54, %s55
      %p67 = scmp.eq.s32.totalorder %s24, 3
      %p68 = por %p66, %p67
      %p70 = scmp.ne.s32.totalorder %s55, %s69
      %p71 = scmp.eq.s32.totalorder %s24, 0
      %p72 = por %p70, %p71
      %s74 = sadd.s32 %s73, 1
      %p77 = scmp.eq.s32.totalorder %s18, 3
      %p78 = scmp.ne.s32.totalorder %s73, %s75
      %p79 = scmp.eq.s32.totalorder %s18, 0
      %p80 = por %p78, %p79
      %p81 = scmp.ne.s32.totalorder %s73, %s75
      %p82 = scmp.eq.s32.totalorder %s23, 3
      %p83 = por %p81, %p82
      %p84 = scmp.ne.s32.totalorder %s75, %s76
      %p85 = scmp.eq.s32.totalorder %s23, 0
      %p86 = por %p84, %p85
      %p87 = scmp.ne.s32.totalorder %s75, %s76
      %p88 = scmp.eq.s32.totalorder %s24, 3
      %p89 = por %p87, %p88
      %p91 = scmp.ne.s32.totalorder %s76, %s90
      %p92 = scmp.eq.s32.totalorder %s24, 0
      %p93 = por %p91, %p92
      %s95 = sadd.s32 %s94, 1
      %p98 = scmp.eq.s32.totalorder %s18, 3
      %p99 = scmp.ne.s32.totalorder %s94, %s96
      %p100 = scmp.eq.s32.totalorder %s18, 0
      %p101 = por %p99, %p100
      %p102 = scmp.ne.s32.totalorder %s94, %s96
      %p103 = scmp.eq.s32.totalorder %s23, 3
      %p104 = por %p102, %p103
      %p105 = scmp.ne.s32.totalorder %s96, %s97
      %p106 = scmp.eq.s32.totalorder %s23, 0
      %p107 = por %p105, %p106
      %p108 = scmp.ne.s32.totalorder %s96, %s97
      %p109 = scmp.eq.s32.totalorder %s24, 3
      %p110 = por %p108, %p109
      %p112 = scmp.ne.s32.totalorder %s97, %s111
      %p113 = scmp.eq.s32.totalorder %s24, 0
      %p114 = por %p112, %p113
      %s115 = ssub.s32 %s18, %s25
      %p116 = scmp.eq.s32.totalorder %s115, 0
      %s118 = sadd.s32 %s117, 1
      %s119 = scalar_select %p116, %s117, %s118
      %p122 = pneg %p116
      %p123 = scmp.eq.s32.totalorder %s18, 3
      %p124 = por %p122, %p123
      %p125 = scmp.ne.s32.totalorder %s117, %s120
      %p126 = scmp.eq.s32.totalorder %s18, 0
      %p127 = por %p125, %p126
      %p128 = scmp.ne.s32.totalorder %s117, %s120
      %p129 = scmp.eq.s32.totalorder %s23, 3
      %p130 = por %p128, %p129
      %p131 = scmp.ne.s32.totalorder %s120, %s121
      %p132 = scmp.eq.s32.totalorder %s23, 0
      %p133 = por %p131, %p132
      %p134 = scmp.ne.s32.totalorder %s120, %s121
      %p135 = scmp.eq.s32.totalorder %s24, 3
      %p136 = por %p134, %p135
      %p138 = scmp.ne.s32.totalorder %s121, %s137
      %p139 = scmp.eq.s32.totalorder %s24, 0
      %p140 = por %p138, %p139
      %p141 = scmp.le.s32.totalorder 1, %s18
      %p142 = scmp.lt.s32.totalorder %s18, 5
      %p143 = pnand %p141, %p142
      %p144 = pneg %p143
      // Predicated region
      $region9: #{tpu_custom_call.1} parent=5 // pred_check
        _
      $region10: #{tpu_custom_call.1} parent=5 // pred_check_branch
        %146 = sbr.rel (%p143) target = $region12
      $region11: #{tpu_custom_call.1} parent=5 // pred_region
        %s147 = ssub.s32 %s18, 1
        // Predicated region
        $region13: #{tpu_custom_call.1} parent=11 // pred_check
          %p148 = pneg %p65
        $region14: #{tpu_custom_call.1} parent=11 // pred_check_branch
          %150 = sbr.rel (%p148) target = $region16
        $region15: #{tpu_custom_call.1} parent=11 // pred_region
          %s152 = ssub.s32 32, 32
          %153 = vsyncadd [#allocation6], %s152
          %s155 = sshll.u32 [#allocation5], 4
          %s156 = int_to_ptr.vmem [resolvable:$true] %s155
          %158 = dma.hbm_to_vmem [thread:$0]  %s1, 32, %s156, [#allocation6]
        $region16: #{tpu_custom_call.1} parent=11 // pred_fallthru
          _
        // Predicated region
        $region17: #{tpu_custom_call.1} parent=11 // pred_check
          %p159 = pneg %p86
        $region18: #{tpu_custom_call.1} parent=11 // pred_check_branch
          %161 = sbr.rel (%p159) target = $region20
        $region19: #{tpu_custom_call.1} parent=11 // pred_region
          %s163 = ssub.s32 16, 16
          %164 = vsyncadd [#allocation6], %s163
          %s166 = sshll.u32 [#allocation7], 4
          %s167 = int_to_ptr.vmem [resolvable:$true] %s166
          %169 = dma.hbm_to_vmem [thread:$0]  %s2, 16, %s167, [#allocation6]
        $region20: #{tpu_custom_call.1} parent=11 // pred_fallthru
          _
        // Predicated region
        $region21: #{tpu_custom_call.1} parent=11 // pred_check
          %p170 = pneg %p107
        $region22: #{tpu_custom_call.1} parent=11 // pred_check_branch
          %172 = sbr.rel (%p170) target = $region24
        $region23: #{tpu_custom_call.1} parent=11 // pred_region
          %s174 = ssub.s32 16, 16
          %175 = vsyncadd [#allocation9], %s174
          %s177 = sshll.u32 [#allocation8], 4
          %s178 = int_to_ptr.vmem [resolvable:$true] %s177
          %180 = dma.hbm_to_vmem [thread:$0]  %s3, 16, %s178, [#allocation9]
        $region24: #{tpu_custom_call.1} parent=11 // pred_fallthru
          _
      $region12: #{tpu_custom_call.1} parent=5 // pred_fallthru
        _
      %p181 = scmp.lt.s32.totalorder %s18, 4
      // Predicated region
      $region25: #{tpu_custom_call.1} parent=5 // pred_check
        %p182 = pneg %p181
      $region26: #{tpu_custom_call.1} parent=5 // pred_check_branch
        %184 = sbr.rel (%p182) target = $region28
      $region27: #{tpu_custom_call.1} parent=5 // pred_region
        // Predicated region
        $region29: #{tpu_custom_call.1} parent=27 // pred_check
          %p185 = pneg %p38
        $region30: #{tpu_custom_call.1} parent=27 // pred_check_branch
          %187 = sbr.rel (%p185) target = $region32
        $region31: #{tpu_custom_call.1} parent=27 // pred_region
          %s188 = sand.u32 %s28, 1
          %s189 = scalar_lea.sflag [#allocation3], %s188
          %s190 = sand.u32 %s28, 1
          %s191 = smul.addr %s190, 64
          %s192 = scalar_lea.vmem [#allocation2], %s191
          %s193 = smul.u32 16, %s18
          %s195 = ssub.s32 1024, 1024
          %196 = vsyncadd %s189, %s195
          %s197 = smul.addr %s193, 64
          %s198 = scalar_lea.hbm %s0, %s197
          %s199 = sshll.u32 %s192, 4
          %s200 = int_to_ptr.vmem [resolvable:$true] %s199
          %205 = dma.hbm_to_vmem [thread:$0]  %s198, 1024, %s200, %s189, 64, 64, 4
        $region32: #{tpu_custom_call.1} parent=27 // pred_fallthru
          _
      $region28: #{tpu_custom_call.1} parent=5 // pred_fallthru
        _
      %p206 = scmp.le.s32.totalorder 1, %s18
      %p207 = scmp.lt.s32.totalorder %s18, 5
      %p208 = pnand %p206, %p207
      %p209 = pneg %p208
      // Predicated region
      $region33: #{tpu_custom_call.1} parent=5 // pred_check
        _
      $region34: #{tpu_custom_call.1} parent=5 // pred_check_branch
        %211 = sbr.rel (%p208) target = $region36
      $region35: #{tpu_custom_call.1} parent=5 // pred_region
        %s212 = ssub.s32 %s18, 1
        %s213 = sand.u32 %s31, 1
        %s214 = scalar_lea.sflag [#allocation3], %s213
        %s215 = sand.u32 %s31, 1
        %s216 = smul.addr %s215, 64
        %s217 = scalar_lea.vmem [#allocation2], %s216
        // Predicated region
        $region37: #{tpu_custom_call.1} parent=35 // pred_check
          %p218 = pneg %p44
        $region38: #{tpu_custom_call.1} parent=35 // pred_check_branch
          %220 = sbr.rel (%p218) target = $region40
        $region39: #{tpu_custom_call.1} parent=35 // pred_region
          %221 = dma.done %s214, 1024
        $region40: #{tpu_custom_call.1} parent=35 // pred_fallthru
          _
        // Predicated region
        $region41: #{tpu_custom_call.1} parent=35 // pred_check
          %p222 = pneg %p65
        $region42: #{tpu_custom_call.1} parent=35 // pred_check_branch
          %224 = sbr.rel (%p222) target = $region44
        $region43: #{tpu_custom_call.1} parent=35 // pred_region
          %225 = dma.done [#allocation6], 32
        $region44: #{tpu_custom_call.1} parent=35 // pred_fallthru
          _
        // Predicated region
        $region45: #{tpu_custom_call.1} parent=35 // pred_check
          %p226 = pneg %p86
        $region46: #{tpu_custom_call.1} parent=35 // pred_check_branch
          %228 = sbr.rel (%p226) target = $region48
        $region47: #{tpu_custom_call.1} parent=35 // pred_region
          %229 = dma.done [#allocation6], 16
        $region48: #{tpu_custom_call.1} parent=35 // pred_fallthru
          _
        // Predicated region
        $region49: #{tpu_custom_call.1} parent=35 // pred_check
          %p230 = pneg %p107
        $region50: #{tpu_custom_call.1} parent=35 // pred_check_branch
          %232 = sbr.rel (%p230) target = $region52
        $region51: #{tpu_custom_call.1} parent=35 // pred_region
          %233 = dma.done [#allocation9], 16
        $region52: #{tpu_custom_call.1} parent=35 // pred_fallthru
          _
        %s234 = sand.u32 %s31, 1
        %s235 = scalar_lea.sflag [#allocation3], %s234
        %s236 = sand.u32 %s31, 1
        %s237 = smul.addr %s236, 64
        %s238 = scalar_lea.vmem [#allocation2], %s237
        %p239 = pneg %p44
        %p240 = pneg %p41
        %p241 = pneg %p65
        %p242 = pneg %p62
        %p243 = pneg %p86
        %p244 = pneg %p83
        %p245 = pneg %p107
        %p246 = pneg %p104
        %p247 = pneg %p133
        %p248 = pneg %p130
        %s249 = sand.u32 %s120, 1
        %s250 = scalar_lea.sflag [#allocation4], %s249
        %s251 = sand.u32 %s120, 1
        %s252 = smul.addr %s251, 64
        %s253 = scalar_lea.vmem [#allocation10], %s252
        %s254 = smul.u32 16, %s23
        %s255 = smul.u32 16, %s23
        %v257 = vld [vmem:[%s217] sm:$0xf]
        %v258 = vld [vmem:[%s217 + $0x4] sm:$0xf]
        %v259 = vld [vmem:[%s217 + $0x8] sm:$0xf]
        %v260 = vld [vmem:[%s217 + $0xc] sm:$0xf]
        %v261 = vld [vmem:[%s217 + $0x10] sm:$0xf]
        %v262 = vld [vmem:[%s217 + $0x14] sm:$0xf]
        %v263 = vld [vmem:[%s217 + $0x18] sm:$0xf]
        %v264 = vld [vmem:[%s217 + $0x1c] sm:$0xf]
        %v265 = vld [vmem:[%s217 + $0x20] sm:$0xf]
        %v266 = vld [vmem:[%s217 + $0x24] sm:$0xf]
        %v267 = vld [vmem:[%s217 + $0x28] sm:$0xf]
        %v268 = vld [vmem:[%s217 + $0x2c] sm:$0xf]
        %v269 = vld [vmem:[%s217 + $0x30] sm:$0xf]
        %v270 = vld [vmem:[%s217 + $0x34] sm:$0xf]
        %v271 = vld [vmem:[%s217 + $0x38] sm:$0xf]
        %v272 = vld [vmem:[%s217 + $0x3c] sm:$0xf]
        %v273 = vld [vmem:[#allocation5] sm:$0x3]
        %v290 = vunpack.c.l.b16 %v257
        %v291 = vunpack.c.l.b16 %v258
        %v292 = vunpack.c.l.b16 %v259
        %v293 = vunpack.c.l.b16 %v260
        %v294 = vunpack.c.l.b16 %v261
        %v295 = vunpack.c.l.b16 %v262
        %v296 = vunpack.c.l.b16 %v263
        %v297 = vunpack.c.l.b16 %v264
        %v298 = vunpack.c.l.b16 %v265
        %v299 = vunpack.c.l.b16 %v266
        %v300 = vunpack.c.l.b16 %v267
        %v301 = vunpack.c.l.b16 %v268
        %v302 = vunpack.c.l.b16 %v269
        %v303 = vunpack.c.l.b16 %v270
        %v304 = vunpack.c.l.b16 %v271
        %v305 = vunpack.c.l.b16 %v272
        %v306 = vpack.c.b16 %v291, %v290
        %v307 = vpack.c.b16 %v293, %v292
        %v308 = vpack.c.b16 %v295, %v294
        %v309 = vpack.c.b16 %v297, %v296
        %v310 = vpack.c.b16 %v299, %v298
        %v311 = vpack.c.b16 %v301, %v300
        %v312 = vpack.c.b16 %v303, %v302
        %v313 = vpack.c.b16 %v305, %v304
        %vm314 = vcmask 31744
        %v316 = vsel %vm314, %v306, 0
        %v319 = vsel %vm314, %v307, 0
        %v322 = vsel %vm314, %v308, 0
        %v325 = vsel %vm314, %v309, 0
        %v328 = vsel %vm314, %v310, 0
        %v331 = vsel %vm314, %v311, 0
        %v334 = vsel %vm314, %v312, 0
        %v337 = vsel %vm314, %v313, 0
        %vm339 = vcmask 1041408
        %v341 = vsel %vm339, %v273, 0
        %343 = vmatprep.subr.bf16.mxu0 0
        %344 = vmatpush1.bf16.msra.mxu0 %v341
        %345 = vmatprep.subr.bf16.mxu0 0
        %346 = vmatpush1.bf16.msra.mxu0 0
        %347 = vmatprep.subr.bf16.mxu0 0
        %348 = vmatpush1.bf16.msra.mxu0 0
        %349 = vmatprep.subr.bf16.mxu0 0
        %350 = vmatpush1.bf16.msra.mxu0 0
        %351 = vmatprep.subr.bf16.mxu0 0
        %352 = vmatpush1.bf16.msra.mxu0 0
        %353 = vmatprep.subr.bf16.mxu0 0
        %354 = vmatpush1.bf16.msra.mxu0 0
        %355 = vmatprep.subr.bf16.mxu0 0
        %356 = vmatpush1.bf16.msra.mxu0 0
        %357 = vmatprep.subr.bf16.mxu0 0
        %358 = vmatpush1.bf16.msra.mxu0 0
        %359 = vmatprep.subr.bf16.mxu0 0
        %360 = vmatpush1.bf16.msra.mxu0 0
        %361 = vmatprep.subr.bf16.mxu0 0
        %362 = vmatpush1.bf16.msra.mxu0 0
        %363 = vmatprep.subr.bf16.mxu0 0
        %364 = vmatpush1.bf16.msra.mxu0 0
        %365 = vmatprep.subr.bf16.mxu0 0
        %366 = vmatpush1.bf16.msra.mxu0 0
        %367 = vmatprep.subr.bf16.mxu0 0
        %368 = vmatpush1.bf16.msra.mxu0 0
        %369 = vmatprep.subr.bf16.mxu0 0
        %370 = vmatpush1.bf16.msra.mxu0 0
        %371 = vmatprep.subr.bf16.mxu0 0
        %372 = vmatpush1.bf16.msra.mxu0 0
        %373 = vmatprep.subr.bf16.mxu0 0
        %374 = vmatpush1.bf16.msra.mxu0 0
        %375 = vmatprep.mubr.bf16.mxu0 0
        %376 = vmatmul.mubr.bf16.gmra.mrb[0].mxu0 %v316
        %v377 = vpop.f32.mrb[0].mxu0
        %v378 = vadd.f32 0.0, %v377
        %v379 = vpop.f32.mrb[0].mxu0
        %v380 = vpop.f32.mrb[0].mxu0
        %v381 = vadd.f32 0.0, %v380
        %v382 = vpop.f32.mrb[0].mxu0
        %383 = vmatprep.mubr.bf16.mxu0 0
        %384 = vmatmul.mubr.bf16.gmra.mrb[0].mxu0 %v319
        %v385 = vpop.f32.mrb[0].mxu0
        %v386 = vadd.f32 0.0, %v385
        %v387 = vpop.f32.mrb[0].mxu0
        %v388 = vpop.f32.mrb[0].mxu0
        %v389 = vadd.f32 0.0, %v388
        %v390 = vpop.f32.mrb[0].mxu0
        %391 = vmatprep.mubr.bf16.mxu0 0
        %392 = vmatmul.mubr.bf16.gmra.mrb[0].mxu0 %v322
        %v393 = vpop.f32.mrb[0].mxu0
        %v394 = vadd.f32 0.0, %v393
        %v395 = vpop.f32.mrb[0].mxu0
        %v396 = vpop.f32.mrb[0].mxu0
        %v397 = vadd.f32 0.0, %v396
        %v398 = vpop.f32.mrb[0].mxu0
        %399 = vmatprep.mubr.bf16.mxu0 0
        %400 = vmatmul.mubr.bf16.gmra.mrb[0].mxu0 %v325
        %v401 = vpop.f32.mrb[0].mxu0
        %v402 = vadd.f32 0.0, %v401
        %v403 = vpop.f32.mrb[0].mxu0
        %v404 = vpop.f32.mrb[0].mxu0
        %v405 = vadd.f32 0.0, %v404
        %v406 = vpop.f32.mrb[0].mxu0
        %407 = vmatprep.mubr.bf16.mxu0 0
        %408 = vmatmul.mubr.bf16.gmra.mrb[0].mxu0 %v328
        %v409 = vpop.f32.mrb[0].mxu0
        %v410 = vadd.f32 0.0, %v409
        %v411 = vpop.f32.mrb[0].mxu0
        %v412 = vpop.f32.mrb[0].mxu0
        %v413 = vadd.f32 0.0, %v412
        %v414 = vpop.f32.mrb[0].mxu0
        %415 = vmatprep.mubr.bf16.mxu0 0
        %416 = vmatmul.mubr.bf16.gmra.mrb[0].mxu0 %v331
        %v417 = vpop.f32.mrb[0].mxu0
        %v418 = vadd.f32 0.0, %v417
        %v419 = vpop.f32.mrb[0].mxu0
        %v420 = vpop.f32.mrb[0].mxu0
        %v421 = vadd.f32 0.0, %v420
        %v422 = vpop.f32.mrb[0].mxu0
        %423 = vmatprep.mubr.bf16.mxu0 0
        %424 = vmatmul.mubr.bf16.gmra.mrb[0].mxu0 %v334
        %v425 = vpop.f32.mrb[0].mxu0
        %v426 = vadd.f32 0.0, %v425
        %v427 = vpop.f32.mrb[0].mxu0
        %v428 = vpop.f32.mrb[0].mxu0
        %v429 = vadd.f32 0.0, %v428
        %v430 = vpop.f32.mrb[0].mxu0
        %431 = vmatprep.mubr.bf16.mxu0 0
        %432 = vmatmul.mubr.bf16.gmra.mrb[0].mxu0 %v337
        %v433 = vpop.f32.mrb[0].mxu0
        %v434 = vadd.f32 0.0, %v433
        %v435 = vpop.f32.mrb[0].mxu0
        %v436 = vpop.f32.mrb[0].mxu0
        %v437 = vadd.f32 0.0, %v436
        %v438 = vpop.f32.mrb[0].mxu0
        %439 = vdwg.mxu0
        %v440 = vld [vmem:[#allocation7] sm:$0x1]
        %v442 = vlaneseq
        %v443 = vshrl.u32 %v442, 7
        %v444 = vsub.s32 0, %v443
        %v445 = vrot.slane %v440, %v444
        %v447 = vmul.f32 %v378, %v445
        %v448 = vmul.f32 %v381, %v445
        %v449 = vmul.f32 %v386, %v445
        %v450 = vmul.f32 %v389, %v445
        %v451 = vmul.f32 %v394, %v445
        %v452 = vmul.f32 %v397, %v445
        %v453 = vmul.f32 %v402, %v445
        %v454 = vmul.f32 %v405, %v445
        %v455 = vmul.f32 %v410, %v445
        %v456 = vmul.f32 %v413, %v445
        %v457 = vmul.f32 %v418, %v445
        %v458 = vmul.f32 %v421, %v445
        %v459 = vmul.f32 %v426, %v445
        %v460 = vmul.f32 %v429, %v445
        %v461 = vmul.f32 %v434, %v445
        %v462 = vmul.f32 %v437, %v445
        %v463 = vld [vmem:[#allocation8] sm:$0x1]
        %v465 = vlaneseq
        %v466 = vshrl.u32 %v465, 7
        %v467 = vsub.s32 0, %v466
        %v468 = vrot.slane %v463, %v467
        %v470 = vadd.f32 %v447, %v468
        %v471 = vadd.f32 %v448, %v468
        %v472 = vadd.f32 %v449, %v468
        %v473 = vadd.f32 %v450, %v468
        %v474 = vadd.f32 %v451, %v468
        %v475 = vadd.f32 %v452, %v468
        %v476 = vadd.f32 %v453, %v468
        %v477 = vadd.f32 %v454, %v468
        %v478 = vadd.f32 %v455, %v468
        %v479 = vadd.f32 %v456, %v468
        %v480 = vadd.f32 %v457, %v468
        %v481 = vadd.f32 %v458, %v468
        %v482 = vadd.f32 %v459, %v468
        %v483 = vadd.f32 %v460, %v468
        %v484 = vadd.f32 %v461, %v468
        %v485 = vadd.f32 %v462, %v468
        %v486 = vmax.f32 %v470, 0.0
        %v487 = vmax.f32 %v471, 0.0
        %v488 = vmax.f32 %v472, 0.0
        %v489 = vmax.f32 %v473, 0.0
        %v490 = vmax.f32 %v474, 0.0
        %v491 = vmax.f32 %v475, 0.0
        %v492 = vmax.f32 %v476, 0.0
        %v493 = vmax.f32 %v477, 0.0
        %v494 = vmax.f32 %v478, 0.0
        %v495 = vmax.f32 %v479, 0.0
        %v496 = vmax.f32 %v480, 0.0
        %v497 = vmax.f32 %v481, 0.0
        %v498 = vmax.f32 %v482, 0.0
        %v499 = vmax.f32 %v483, 0.0
        %v500 = vmax.f32 %v484, 0.0
        %v501 = vmax.f32 %v485, 0.0
        %v502 = vpack.c.bf16 %v487, %v486
        %v503 = vpack.c.bf16 %v489, %v488
        %v504 = vpack.c.bf16 %v491, %v490
        %v505 = vpack.c.bf16 %v493, %v492
        %v506 = vpack.c.bf16 %v495, %v494
        %v507 = vpack.c.bf16 %v497, %v496
        %v508 = vpack.c.bf16 %v499, %v498
        %v509 = vpack.c.bf16 %v501, %v500
        %v518 = vunpack.c.l.b16 %v502
        %v519 = vunpack.c.h.b16 %v502
        %v520 = vunpack.c.l.b16 %v503
        %v521 = vunpack.c.h.b16 %v503
        %v522 = vunpack.c.l.b16 %v504
        %v523 = vunpack.c.h.b16 %v504
        %v524 = vunpack.c.l.b16 %v505
        %v525 = vunpack.c.h.b16 %v505
        %v526 = vunpack.c.l.b16 %v506
        %v527 = vunpack.c.h.b16 %v506
        %v528 = vunpack.c.l.b16 %v507
        %v529 = vunpack.c.h.b16 %v507
        %v530 = vunpack.c.l.b16 %v508
        %v531 = vunpack.c.h.b16 %v508
        %v532 = vunpack.c.l.b16 %v509
        %v533 = vunpack.c.h.b16 %v509
        %v534 = vpack.c.b16 %v518, %v518
        %v535 = vpack.c.b16 %v519, %v519
        %v536 = vpack.c.b16 %v520, %v520
        %v537 = vpack.c.b16 %v521, %v521
        %v538 = vpack.c.b16 %v522, %v522
        %v539 = vpack.c.b16 %v523, %v523
        %v540 = vpack.c.b16 %v524, %v524
        %v541 = vpack.c.b16 %v525, %v525
        %v542 = vpack.c.b16 %v526, %v526
        %v543 = vpack.c.b16 %v527, %v527
        %v544 = vpack.c.b16 %v528, %v528
        %v545 = vpack.c.b16 %v529, %v529
        %v546 = vpack.c.b16 %v530, %v530
        %v547 = vpack.c.b16 %v531, %v531
        %v548 = vpack.c.b16 %v532, %v532
        %v549 = vpack.c.b16 %v533, %v533
        %566 = vst [vmem:[%s253] sm:$0xf] %v534
        %567 = vst [vmem:[%s253 + $0x4] sm:$0xf] %v535
        %568 = vst [vmem:[%s253 + $0x8] sm:$0xf] %v536
        %569 = vst [vmem:[%s253 + $0xc] sm:$0xf] %v537
        %570 = vst [vmem:[%s253 + $0x10] sm:$0xf] %v538
        %571 = vst [vmem:[%s253 + $0x14] sm:$0xf] %v539
        %572 = vst [vmem:[%s253 + $0x18] sm:$0xf] %v540
        %573 = vst [vmem:[%s253 + $0x1c] sm:$0xf] %v541
        %574 = vst [vmem:[%s253 + $0x20] sm:$0xf] %v542
        %575 = vst [vmem:[%s253 + $0x24] sm:$0xf] %v543
        %576 = vst [vmem:[%s253 + $0x28] sm:$0xf] %v544
        %577 = vst [vmem:[%s253 + $0x2c] sm:$0xf] %v545
        %578 = vst [vmem:[%s253 + $0x30] sm:$0xf] %v546
        %579 = vst [vmem:[%s253 + $0x34] sm:$0xf] %v547
        %580 = vst [vmem:[%s253 + $0x38] sm:$0xf] %v548
        %581 = vst [vmem:[%s253 + $0x3c] sm:$0xf] %v549
        %s582 = sand.u32 %s120, 1
        %s583 = scalar_lea.sflag [#allocation4], %s582
        %s584 = sand.u32 %s120, 1
        %s585 = smul.addr %s584, 64
        %s586 = scalar_lea.vmem [#allocation10], %s585
        // Predicated region
        $region53: #{tpu_custom_call.1} parent=35 // pred_check
          %p587 = pneg %p130
        $region54: #{tpu_custom_call.1} parent=35 // pred_check_branch
          %589 = sbr.rel (%p587) target = $region56
        $region55: #{tpu_custom_call.1} parent=35 // pred_region
          %s590 = smul.u32 16, %s23
          %s592 = ssub.s32 1024, 1024
          %593 = vsyncadd %s583, %s592
          %s594 = smul.addr %s590, 64
          %s595 = scalar_lea.hbm %s4, %s594
          %s596 = sshll.u32 %s586, 4
          %s597 = int_to_ptr.vmem [resolvable:$true] %s596
          %602 = dma.vmem_to_hbm [thread:$0]  %s597, 1024, %s595, %s583, 64, 64, 4
        $region56: #{tpu_custom_call.1} parent=35 // pred_fallthru
          _
      $region36: #{tpu_custom_call.1} parent=5 // pred_fallthru
        _
      %p603 = scmp.le.s32.totalorder 2, %s18
      // Predicated region
      $region57: #{tpu_custom_call.1} parent=5 // pred_check
        %p604 = pneg %p603
      $region58: #{tpu_custom_call.1} parent=5 // pred_check_branch
        %606 = sbr.rel (%p604) target = $region60
      $region59: #{tpu_custom_call.1} parent=5 // pred_region
        %s607 = ssub.s32 %s18, 2
        // Predicated region
        $region61: #{tpu_custom_call.1} parent=59 // pred_check
          %p608 = pneg %p136
        $region62: #{tpu_custom_call.1} parent=59 // pred_check_branch
          %610 = sbr.rel (%p608) target = $region64
        $region63: #{tpu_custom_call.1} parent=59 // pred_region
          %s611 = sand.u32 %s121, 1
          %s612 = scalar_lea.sflag [#allocation4], %s611
          %s613 = sand.u32 %s121, 1
          %s614 = smul.addr %s613, 64
          %s615 = scalar_lea.vmem [#allocation10], %s614
          %616 = dma.done %s612, 1024
        $region64: #{tpu_custom_call.1} parent=59 // pred_fallthru
          _
      $region60: #{tpu_custom_call.1} parent=5 // pred_fallthru
        _
    $region6: #{tpu_custom_call.1} parent=1 // loop_footer
      %s22 = sadd.s32 1, %s18
    $region7: #{tpu_custom_call.1} parent=1 // loop_footer_branch
      %17 = sbr.rel target = $region3
    $region8: #{tpu_custom_call.1} parent=1 // loop_exit
      _
    %617 = vsyncpa [#allocation3], 1
    %s618 = scalar_lea.sflag [#allocation3], 1
    %619 = vsyncpa %s618, 1
    %620 = vsyncpa [#allocation6], 1
    %621 = vsyncpa [#allocation9], 1
    %622 = vsyncpa [#allocation4], 1
    %s623 = scalar_lea.sflag [#allocation4], 1
    %624 = vsyncpa %s623, 1

</llo_original>
